<compile_context>
chip_gen: v6e
topology: v6e:2x2x1
jax: 0.10.0
libtpu: 0.0.40
codegen_flags: <defaults>
</compile_context>

<pallas_src>
import functools
import jax
import jax.numpy as jnp
from jax.experimental import pallas as pl
from jax.experimental.pallas import tpu as pltpu


# --------------------------- fused regressor-head kernel ---------------------------
def fused_regressor_kernel(patches_ref, wc_ref, pm_ref, wl_ref, bl_ref, wf_ref, bf_ref,
                           o_ref, *, batch, pool):
    """Single grid step over the whole (small) batch.

    patches_ref: (B*H*W, Kpad)      bf16 im2col of the backbone map, K = 9*Cin padded to 128
    wc_ref     : (Kpad, Cout)       bf16 3x3 conv weight (image channels), rows (dy, dx, c)
    pm_ref     : (PP*B, B*H*W)      bf16 block-diagonal adaptive-avg-pool matrix, rows (p, b)
    wl_ref     : (PP*Cout, F)       bf16 link weight, rows (ph, pw, c); eval-BN folded in
    bl_ref     : (1, F)             f32 link bias; eval-BN + coord-channel conv term folded in
    wf_ref     : (F, Nout_pad)      bf16 final fc weight, lane-padded
    bf_ref     : (1, Nout_pad)      f32 final fc bias, lane-padded
    o_ref      : (B, Nout_pad)      f32
    """
    B = batch
    PP = pool * pool
    Cout = wc_ref.shape[1]
    F = wl_ref.shape[1]

    # 3x3 CoordConv (image channels) as one lane-dense MXU contraction.
    conv = jnp.dot(patches_ref[...], wc_ref[...],
                   preferred_element_type=jnp.float32)            # (B*H*W, Cout), f32

    # AdaptiveAvgPool2d(pool) as a single MXU matmul against a 0 / (1/area) matrix.
    # Rows of `pooled` are ordered (pool-cell p, batch b).
    pooled = jnp.dot(pm_ref[...], conv.astype(jnp.bfloat16),
                     preferred_element_type=jnp.float32)          # (PP*B, Cout), f32

    # Link fc (coord-channel term + eval-mode BN already folded into wl/bl).
    # Accumulate per pool cell with static slices (avoids a minor-dim reshape in-kernel).
    acc = jnp.zeros((B, F), jnp.float32)
    for p in range(PP):                                           # PP is tiny and static
        acc = acc + jnp.dot(pooled[p * B:(p + 1) * B, :].astype(jnp.bfloat16),
                            wl_ref[p * Cout:(p + 1) * Cout, :],
                            preferred_element_type=jnp.float32)
    h = acc + bl_ref[...]

    # Dropout = identity in eval mode; LeakyReLU default negative_slope = 0.01 (f32 VALU).
    h = jnp.where(h >= 0.0, h, 0.01 * h)

    # Final fc, lane-dense store.
    o_ref[...] = jnp.dot(h.astype(jnp.bfloat16), wf_ref[...],
                         preferred_element_type=jnp.float32) + bf_ref[...]


# ----------------------------------- wrapper ----------------------------------------
@functools.partial(jax.jit, static_argnames=("pool", "output_shape"))
def landmark_regression_forward(x_nchw, params, *, pool, output_shape):
    """x_nchw: backbone feature map, NCHW (B, inplanes, H, W)."""
    B, Cin, H, W = x_nchw.shape
    hidden = params["conv_w"].shape[0]
    feat = params["link_w"].shape[0]                               # 4*hidden
    n_out = 1
    for d in output_shape:
        n_out *= d
    PP = pool * pool
    HW = H * W
    rh, rw = H // pool, W // pool
    inv_area = 1.0 / float(rh * rw)

    # ---- parameter preprocessing (fused under jit; runs alongside the activation prep) ----
    # conv weight: PyTorch (Cout, Cin+2, 3, 3) -> (3, 3, Cin+2, Cout); split image / coord chans
    w_k = jnp.transpose(params["conv_w"].astype(jnp.float32), (2, 3, 1, 0))
    k_img = 9 * Cin
    k_pad = ((k_img + 127) // 128) * 128
    w_img = w_k[:, :, :Cin, :].reshape(k_img, hidden)              # rows ordered (dy, dx, c)
    w_img = jnp.pad(w_img, ((0, k_pad - k_img), (0, 0))).astype(jnp.bfloat16)
    w_coord = w_k[:, :, Cin:, :]                                   # (3, 3, 2, Cout)

    # CoordConv coordinate channels (x, y), linspace(-1, 1) -- input-independent contribution.
    # TODO(synk): verify coord order/normalization against the facer CoordConv2d implementation.
    ys = jnp.linspace(-1.0, 1.0, H, dtype=jnp.float32)
    xs = jnp.linspace(-1.0, 1.0, W, dtype=jnp.float32)
    coords = jnp.stack([jnp.broadcast_to(xs[None, :], (H, W)),
                        jnp.broadcast_to(ys[:, None], (H, W))], axis=-1)     # (H, W, 2)
    coords_pad = jnp.pad(coords, ((1, 1), (1, 1), (0, 0)))
    cb = jnp.zeros((H, W, hidden), jnp.float32)                    # coord-channel conv term
    for dy in range(3):
        for dx in range(3):
            cb = cb + coords_pad[dy:dy + H, dx:dx + W, :] @ w_coord[dy, dx]
    # pooled coord term, flattened in (ph, pw, c) order
    cb_pooled = cb.reshape(pool, rh, pool, rw, hidden).mean(axis=(1, 3)).reshape(-1)

    # link weight: PyTorch in-index = c*pool*pool + ph*pool + pw  ->  rows ordered (ph, pw, c)
    wl = params["link_w"].astype(jnp.float32).T.reshape(hidden, pool, pool, feat)
    wl = jnp.transpose(wl, (1, 2, 0, 3)).reshape(PP * hidden, feat)

    # Fold (a) coord-channel contribution (conv bias=False, pool/link linear) and
    # (b) eval-mode BatchNorm1d (eps=1e-5) into the link weight/bias.
    # TODO(synk): training-mode BN batch stats / Dropout not implemented.
    scale = params["bn_g"].astype(jnp.float32) * jax.lax.rsqrt(
        params["bn_rv"].astype(jnp.float32) + 1e-5)
    bl = ((params["link_b"].astype(jnp.float32) + cb_pooled @ wl
           - params["bn_rm"].astype(jnp.float32)) * scale
          + params["bn_b"].astype(jnp.float32)).reshape(1, feat)
    wl = (wl * scale[None, :]).astype(jnp.bfloat16)

    # final fc, output lane-padded to a multiple of 128 for a dense store
    n_pad = ((n_out + 127) // 128) * 128
    wf = jnp.pad(params["fc_w"].astype(jnp.float32).T,
                 ((0, 0), (0, n_pad - n_out))).astype(jnp.bfloat16)
    bf = jnp.pad(params["fc_b"].astype(jnp.float32), ((0, n_pad - n_out),)).reshape(1, n_pad)

    # Block-diagonal adaptive-avg-pool matrix, rows ordered (pool-cell p, batch b).
    # TODO(synk): assumes H, W divisible by pool (PyTorch uses variable bin boundaries otherwise).
    p_of_s = ((jnp.arange(H) // rh)[:, None] * pool
              + (jnp.arange(W) // rw)[None, :]).reshape(HW)
    pm_single = (jnp.arange(PP)[:, None] == p_of_s[None, :]).astype(jnp.float32) * inv_area
    pm = (jnp.eye(B, dtype=jnp.float32)[None, :, :, None]
          * pm_single[:, None, None, :]).reshape(PP * B, B * HW).astype(jnp.bfloat16)

    # ---- wrapper-side im2col (fused under jit), K lane-padded to a multiple of 128 ----
    # TODO(synk): for realistic sizes, have the backbone emit NHWC to avoid the transpose.
    x = jnp.transpose(x_nchw.astype(jnp.float32), (0, 2, 3, 1))    # (B, H, W, Cin)
    xpad = jnp.pad(x, ((0, 0), (1, 1), (1, 1), (0, 0)))
    patches = jnp.concatenate(
        [xpad[:, dy:dy + H, dx:dx + W, :] for dy in range(3) for dx in range(3)],
        axis=-1).reshape(B * HW, k_img)
    patches = jnp.pad(patches, ((0, 0), (0, k_pad - k_img))).astype(jnp.bfloat16)

    flops = 2 * (B * HW * k_pad * hidden          # conv
                 + PP * B * (B * HW) * hidden     # pooling matmul
                 + B * PP * hidden * feat         # link
                 + B * feat * n_pad)              # final fc
    bytes_accessed = (B * HW * k_pad * 2 + k_pad * hidden * 2 + PP * B * B * HW * 2
                      + PP * hidden * feat * 2 + feat * 4 + feat * n_pad * 2
                      + n_pad * 4 + B * n_pad * 4)

    out = pl.pallas_call(
        functools.partial(fused_regressor_kernel, batch=B, pool=pool),
        out_shape=jax.ShapeDtypeStruct((B, n_pad), jnp.float32),
        compiler_params=pltpu.CompilerParams(vmem_limit_bytes=32 * 1024 * 1024),
        cost_estimate=pl.CostEstimate(flops=flops, transcendentals=0,
                                      bytes_accessed=bytes_accessed),
    )(patches, w_img, pm, wl, bl, wf, bf)

    return out[:, :n_out].reshape((-1,) + tuple(output_shape))


# -------------------------- pure-JAX reference (eval mode) ---------------------------
def reference_forward(x_nchw, params, pool, output_shape):
    B, Cin, H, W = x_nchw.shape
    hidden = params["conv_w"].shape[0]
    ys = jnp.linspace(-1.0, 1.0, H, dtype=jnp.float32)
    xs = jnp.linspace(-1.0, 1.0, W, dtype=jnp.float32)
    cx = jnp.broadcast_to(xs[None, :], (H, W))
    cy = jnp.broadcast_to(ys[:, None], (H, W))
    coords = jnp.stack([cx, cy], axis=0)                           # (2, H, W)
    xin = jnp.concatenate([x_nchw, jnp.broadcast_to(coords, (B, 2, H, W))], axis=1)
    conv = jax.lax.conv_general_dilated(xin, params["conv_w"], (1, 1), ((1, 1), (1, 1)),
                                        dimension_numbers=("NCHW", "OIHW", "NCHW"))
    rh, rw = H // pool, W // pool
    pooled = conv.reshape(B, hidden, pool, rh, pool, rw).mean(axis=(3, 5))
    flat = pooled.reshape(B, -1)
    h = flat @ params["link_w"].T + params["link_b"]
    scale = params["bn_g"] / jnp.sqrt(params["bn_rv"] + 1e-5)
    h = (h - params["bn_rm"]) * scale + params["bn_b"]
    h = jnp.where(h >= 0.0, h, 0.01 * h)
    out = h @ params["fc_w"].T + params["fc_b"]
    return out.reshape((-1,) + tuple(output_shape))


# ------------------------------------- main ------------------------------------------
if __name__ == "__main__":
    key = jax.random.PRNGKey(0)
    ks = jax.random.split(key, 8)

    # small synthetic sizes
    B = 2
    inplanes = 8           # backbone.inplanes (stand-in)
    H = W = 16             # backbone feature spatial size
    hidden = 32            # hidden_channels
    pool = 2               # pool_size
    output_shape = (5, 2)  # e.g. 5 landmarks x 2 coords
    n_out = output_shape[0] * output_shape[1]
    link_out = hidden * 4

    params = {
        # CoordConv2d: (hidden, inplanes+2, 3, 3), bias=False
        "conv_w": 0.05 * jax.random.normal(ks[0], (hidden, inplanes + 2, 3, 3), jnp.float32),
        # RegressionLink fc: Linear(hidden*pool*pool -> hidden*4)
        "link_w": 0.05 * jax.random.normal(ks[1], (link_out, hidden * pool * pool), jnp.float32),
        "link_b": 0.05 * jax.random.normal(ks[2], (link_out,), jnp.float32),
        # BatchNorm1d(hidden*4), eval mode running stats
        "bn_g": jnp.ones((link_out,), jnp.float32),
        "bn_b": jnp.zeros((link_out,), jnp.float32),
        "bn_rm": 0.01 * jax.random.normal(ks[3], (link_out,), jnp.float32),
        "bn_rv": jnp.ones((link_out,), jnp.float32) + 0.01 * jax.random.uniform(ks[4], (link_out,)),
        # final fc: Linear(hidden*4 -> output_shape.numel())
        "fc_w": 0.05 * jax.random.normal(ks[5], (n_out, link_out), jnp.float32),
        "fc_b": 0.05 * jax.random.normal(ks[6], (n_out,), jnp.float32),
    }

    # input = backbone output feature map (TODO(synk): full ResNet backbone not replicated)
    x = jax.random.normal(ks[7], (B, inplanes, H, W), jnp.float32)

    y = landmark_regression_forward(x, params, pool=pool, output_shape=output_shape)
    y = jax.block_until_ready(y)
    assert y.shape == (B,) + output_shape, y.shape

    # loose tolerance: kernel uses bf16 matmul inputs with f32 accumulation
    y_ref = reference_forward(x, params, pool, output_shape)
    err = float(jnp.max(jnp.abs(y - y_ref)))
    tol = 1e-2 + 5e-2 * float(jnp.max(jnp.abs(y_ref)))
    assert err < tol, f"max abs err {err} vs tol {tol}"
    print("KERNEL_OK")
</pallas_src>

<mosaic_0001>
module attributes {stable_mosaic.version = 11 : i64} {
  func.func @fused_regressor_kernel(%arg0: memref<512x128xbf16, #tpu.memory_space<vmem>>, %arg1: memref<128x32xbf16, #tpu.memory_space<vmem>>, %arg2: memref<8x512xbf16, #tpu.memory_space<vmem>>, %arg3: memref<128x128xbf16, #tpu.memory_space<vmem>>, %arg4: memref<1x128xf32, #tpu.memory_space<vmem>>, %arg5: memref<128x128xbf16, #tpu.memory_space<vmem>>, %arg6: memref<1x128xf32, #tpu.memory_space<vmem>>, %arg7: memref<2x128xf32, #tpu.memory_space<vmem>>) attributes {dimension_semantics = [], scalar_prefetch = 0 : i64, scratch_operands = 0 : i64, tpu.core_type = #tpu.core_type<tc>} {
    %c0 = arith.constant 0 : index
    %c0_0 = arith.constant 0 : index
    %0 = vector.load %arg0[%c0, %c0_0] : memref<512x128xbf16, #tpu.memory_space<vmem>>, vector<512x128xbf16>
    %c0_1 = arith.constant 0 : index
    %c0_2 = arith.constant 0 : index
    %1 = vector.load %arg1[%c0_1, %c0_2] : memref<128x32xbf16, #tpu.memory_space<vmem>>, vector<128x32xbf16>
    %cst = arith.constant dense<0.000000e+00> : vector<512x32xf32>
    %2 = tpu.matmul %0, %1, %cst {dimension_numbers = #tpu.dot_dimension_numbers<[1], [0], [0], [1], [0, 0, 1, 1], [], []>} : vector<512x128xbf16>, vector<128x32xbf16>, vector<512x32xf32> -> vector<512x32xf32>
    %c0_3 = arith.constant 0 : index
    %c0_4 = arith.constant 0 : index
    %3 = vector.load %arg2[%c0_3, %c0_4] : memref<8x512xbf16, #tpu.memory_space<vmem>>, vector<8x512xbf16>
    %4 = arith.truncf %2 : vector<512x32xf32> to vector<512x32xbf16>
    %cst_5 = arith.constant dense<0.000000e+00> : vector<8x32xf32>
    %5 = tpu.matmul %3, %4, %cst_5 {dimension_numbers = #tpu.dot_dimension_numbers<[1], [0], [0], [1], [0, 0, 1, 1], [], []>} : vector<8x512xbf16>, vector<512x32xbf16>, vector<8x32xf32> -> vector<8x32xf32>
    %cst_6 = arith.constant 0.000000e+00 : f32
    %6 = vector.broadcast %cst_6 : f32 to vector<2x128xf32>
    %7 = vector.extract_strided_slice %5 {offsets = [0, 0], sizes = [2, 32], strides = [1, 1]} : vector<8x32xf32> to vector<2x32xf32>
    %8 = arith.truncf %7 : vector<2x32xf32> to vector<2x32xbf16>
    %c0_7 = arith.constant 0 : index
    %c0_8 = arith.constant 0 : index
    %9 = vector.load %arg3[%c0_7, %c0_8] : memref<128x128xbf16, #tpu.memory_space<vmem>>, vector<32x128xbf16>
    %cst_9 = arith.constant dense<0.000000e+00> : vector<2x128xf32>
    %10 = tpu.matmul %8, %9, %cst_9 {dimension_numbers = #tpu.dot_dimension_numbers<[1], [0], [0], [1], [0, 0, 1, 1], [], []>} : vector<2x32xbf16>, vector<32x128xbf16>, vector<2x128xf32> -> vector<2x128xf32>
    %11 = arith.addf %6, %10 : vector<2x128xf32>
    %12 = vector.extract_strided_slice %5 {offsets = [2, 0], sizes = [2, 32], strides = [1, 1]} : vector<8x32xf32> to vector<2x32xf32>
    %13 = arith.truncf %12 : vector<2x32xf32> to vector<2x32xbf16>
    %c32 = arith.constant 32 : index
    %c0_10 = arith.constant 0 : index
    %14 = vector.load %arg3[%c32, %c0_10] : memref<128x128xbf16, #tpu.memory_space<vmem>>, vector<32x128xbf16>
    %cst_11 = arith.constant dense<0.000000e+00> : vector<2x128xf32>
    %15 = tpu.matmul %13, %14, %cst_11 {dimension_numbers = #tpu.dot_dimension_numbers<[1], [0], [0], [1], [0, 0, 1, 1], [], []>} : vector<2x32xbf16>, vector<32x128xbf16>, vector<2x128xf32> -> vector<2x128xf32>
    %16 = arith.addf %11, %15 : vector<2x128xf32>
    %17 = vector.extract_strided_slice %5 {offsets = [4, 0], sizes = [2, 32], strides = [1, 1]} : vector<8x32xf32> to vector<2x32xf32>
    %18 = arith.truncf %17 : vector<2x32xf32> to vector<2x32xbf16>
    %c64 = arith.constant 64 : index
    %c0_12 = arith.constant 0 : index
    %19 = vector.load %arg3[%c64, %c0_12] : memref<128x128xbf16, #tpu.memory_space<vmem>>, vector<32x128xbf16>
    %cst_13 = arith.constant dense<0.000000e+00> : vector<2x128xf32>
    %20 = tpu.matmul %18, %19, %cst_13 {dimension_numbers = #tpu.dot_dimension_numbers<[1], [0], [0], [1], [0, 0, 1, 1], [], []>} : vector<2x32xbf16>, vector<32x128xbf16>, vector<2x128xf32> -> vector<2x128xf32>
    %21 = arith.addf %16, %20 : vector<2x128xf32>
    %22 = vector.extract_strided_slice %5 {offsets = [6, 0], sizes = [2, 32], strides = [1, 1]} : vector<8x32xf32> to vector<2x32xf32>
    %23 = arith.truncf %22 : vector<2x32xf32> to vector<2x32xbf16>
    %c96 = arith.constant 96 : index
    %c0_14 = arith.constant 0 : index
    %24 = vector.load %arg3[%c96, %c0_14] : memref<128x128xbf16, #tpu.memory_space<vmem>>, vector<32x128xbf16>
    %cst_15 = arith.constant dense<0.000000e+00> : vector<2x128xf32>
    %25 = tpu.matmul %23, %24, %cst_15 {dimension_numbers = #tpu.dot_dimension_numbers<[1], [0], [0], [1], [0, 0, 1, 1], [], []>} : vector<2x32xbf16>, vector<32x128xbf16>, vector<2x128xf32> -> vector<2x128xf32>
    %26 = arith.addf %21, %25 : vector<2x128xf32>
    %c0_16 = arith.constant 0 : index
    %c0_17 = arith.constant 0 : index
    %27 = vector.load %arg4[%c0_16, %c0_17] : memref<1x128xf32, #tpu.memory_space<vmem>>, vector<1x128xf32>
    %28 = vector.broadcast %27 : vector<1x128xf32> to vector<2x128xf32>
    %29 = arith.addf %26, %28 : vector<2x128xf32>
    %cst_18 = arith.constant 0.000000e+00 : f32
    %30 = vector.broadcast %cst_18 : f32 to vector<2x128xf32>
    %31 = arith.cmpf oge, %29, %30 : vector<2x128xf32>
    %cst_19 = arith.constant 0.00999999977 : f32
    %32 = vector.broadcast %cst_19 : f32 to vector<2x128xf32>
    %33 = arith.mulf %32, %29 : vector<2x128xf32>
    %34 = arith.select %31, %29, %33 : vector<2x128xi1>, vector<2x128xf32>
    %35 = arith.truncf %34 : vector<2x128xf32> to vector<2x128xbf16>
    %c0_20 = arith.constant 0 : index
    %c0_21 = arith.constant 0 : index
    %36 = vector.load %arg5[%c0_20, %c0_21] : memref<128x128xbf16, #tpu.memory_space<vmem>>, vector<128x128xbf16>
    %cst_22 = arith.constant dense<0.000000e+00> : vector<2x128xf32>
    %37 = tpu.matmul %35, %36, %cst_22 {dimension_numbers = #tpu.dot_dimension_numbers<[1], [0], [0], [1], [0, 0, 1, 1], [], []>} : vector<2x128xbf16>, vector<128x128xbf16>, vector<2x128xf32> -> vector<2x128xf32>
    %c0_23 = arith.constant 0 : index
    %c0_24 = arith.constant 0 : index
    %38 = vector.load %arg6[%c0_23, %c0_24] : memref<1x128xf32, #tpu.memory_space<vmem>>, vector<1x128xf32>
    %39 = vector.broadcast %38 : vector<1x128xf32> to vector<2x128xf32>
    %40 = arith.addf %37, %39 : vector<2x128xf32>
    %c0_25 = arith.constant 0 : index
    %c0_26 = arith.constant 0 : index
    %41 = vector.load %arg7[%c0_25, %c0_26] : memref<2x128xf32, #tpu.memory_space<vmem>>, vector<2x128xf32>
    tpu.vector_store %arg7[%c0_25, %c0_26], %40 {strides = array<i32>} : memref<2x128xf32, #tpu.memory_space<vmem>>, vector<2x128xf32>,
    return
  }
}

</mosaic_0001>

<llo_original>
// kernel: landmark_regression_forward.1
$region0: #{landmark_regression_forward.1}
  #allocation0 [shape = 'u32[]', space=smem, size = 0x4, offset = 0x4, fixed_abs, tag = 'smem constant byte address 0x4 - core index']
  #allocation1 [shape = 'u32[144,128]{1,0:T(1,128)}', space=vmem, size = 0x12000, scoped, tag = 'internal scratch']
  %s0 = inlined_call_operand.vmem [shape: bf16[512,128], index: 0, kind: input, shape index: {}]
  %s1 = inlined_call_operand.vmem [shape: bf16[128,32], index: 1, kind: input, shape index: {}]
  %s2 = inlined_call_operand.vmem [shape: bf16[8,512], index: 2, kind: input, shape index: {}]
  %s3 = inlined_call_operand.vmem [shape: bf16[128,128], index: 3, kind: input, shape index: {}]
  %s4 = inlined_call_operand.vmem [shape: f32[1,128], index: 4, kind: input, shape index: {}]
  %s5 = inlined_call_operand.vmem [shape: bf16[128,128], index: 5, kind: input, shape index: {}]
  %s6 = inlined_call_operand.vmem [shape: f32[1,128], index: 6, kind: input, shape index: {}]
  %s7 = inlined_call_operand.vmem [shape: f32[2,128], index: 7, kind: output, shape index: {}]
  %s8 = sld [smem:[#allocation0]]
  $region38: #{landmark_regression_forward.1} parent=0
    _
  %s10 = ssub.s32 1, %s8
  %s11 = scalar_select 0, %s10, %s8
  // Predicated region
  $region2: #{landmark_regression_forward.1} parent=0 // pred_check
    _
  $region3: #{landmark_regression_forward.1} parent=0 // pred_check_branch
    %13 = sbr.rel (0) target = $region5
  $region4: #{landmark_regression_forward.1} parent=0 // pred_region
    _
  $region5: #{landmark_regression_forward.1} parent=0 // pred_fallthru
    _
  // Predicated region
  $region6: #{landmark_regression_forward.1} parent=0 // pred_check
    _
  $region7: #{landmark_regression_forward.1} parent=0 // pred_check_branch
    %15 = sbr.rel (0) target = $region9
  $region8: #{landmark_regression_forward.1} parent=0 // pred_region
    _
  $region9: #{landmark_regression_forward.1} parent=0 // pred_fallthru
    _
  // Predicated region
  $region10: #{landmark_regression_forward.1} parent=0 // pred_check
    _
  $region11: #{landmark_regression_forward.1} parent=0 // pred_check_branch
    %17 = sbr.rel (0) target = $region13
  $region12: #{landmark_regression_forward.1} parent=0 // pred_region
    _
  $region13: #{landmark_regression_forward.1} parent=0 // pred_fallthru
    _
  // Predicated region
  $region14: #{landmark_regression_forward.1} parent=0 // pred_check
    _
  $region15: #{landmark_regression_forward.1} parent=0 // pred_check_branch
    %19 = sbr.rel (0) target = $region17
  $region16: #{landmark_regression_forward.1} parent=0 // pred_region
    _
  $region17: #{landmark_regression_forward.1} parent=0 // pred_fallthru
    _
  // Predicated region
  $region18: #{landmark_regression_forward.1} parent=0 // pred_check
    _
  $region19: #{landmark_regression_forward.1} parent=0 // pred_check_branch
    %21 = sbr.rel (0) target = $region21
  $region20: #{landmark_regression_forward.1} parent=0 // pred_region
    _
  $region21: #{landmark_regression_forward.1} parent=0 // pred_fallthru
    _
  // Predicated region
  $region22: #{landmark_regression_forward.1} parent=0 // pred_check
    _
  $region23: #{landmark_regression_forward.1} parent=0 // pred_check_branch
    %23 = sbr.rel (0) target = $region25
  $region24: #{landmark_regression_forward.1} parent=0 // pred_region
    _
  $region25: #{landmark_regression_forward.1} parent=0 // pred_fallthru
    _
  // Predicated region
  $region26: #{landmark_regression_forward.1} parent=0 // pred_check
    _
  $region27: #{landmark_regression_forward.1} parent=0 // pred_check_branch
    %25 = sbr.rel (0) target = $region29
  $region28: #{landmark_regression_forward.1} parent=0 // pred_region
    _
  $region29: #{landmark_regression_forward.1} parent=0 // pred_fallthru
    _
  %v27 = vld [vmem:[%s0] sm:$0xf]
  %v28 = vld [vmem:[%s0 + $0x4] sm:$0xf]
  %v29 = vld [vmem:[%s0 + $0x8] sm:$0xf]
  %v30 = vld [vmem:[%s0 + $0xc] sm:$0xf]
  %v31 = vld [vmem:[%s0 + $0x10] sm:$0xf]
  %v32 = vld [vmem:[%s0 + $0x14] sm:$0xf]
  %v33 = vld [vmem:[%s0 + $0x18] sm:$0xf]
  %v34 = vld [vmem:[%s0 + $0x1c] sm:$0xf]
  %v35 = vld [vmem:[%s0 + $0x20] sm:$0xf]
  %v36 = vld [vmem:[%s0 + $0x24] sm:$0xf]
  %v37 = vld [vmem:[%s0 + $0x28] sm:$0xf]
  %v38 = vld [vmem:[%s0 + $0x2c] sm:$0xf]
  %v39 = vld [vmem:[%s0 + $0x30] sm:$0xf]
  %v40 = vld [vmem:[%s0 + $0x34] sm:$0xf]
  %v41 = vld [vmem:[%s0 + $0x38] sm:$0xf]
  %v42 = vld [vmem:[%s0 + $0x3c] sm:$0xf]
  %v43 = vld [vmem:[%s0 + $0x40] sm:$0xf]
  %v44 = vld [vmem:[%s0 + $0x44] sm:$0xf]
  %v45 = vld [vmem:[%s0 + $0x48] sm:$0xf]
  %v46 = vld [vmem:[%s0 + $0x4c] sm:$0xf]
  %v47 = vld [vmem:[%s0 + $0x50] sm:$0xf]
  %v48 = vld [vmem:[%s0 + $0x54] sm:$0xf]
  %v49 = vld [vmem:[%s0 + $0x58] sm:$0xf]
  %v50 = vld [vmem:[%s0 + $0x5c] sm:$0xf]
  %v51 = vld [vmem:[%s0 + $0x60] sm:$0xf]
  %v52 = vld [vmem:[%s0 + $0x64] sm:$0xf]
  %v53 = vld [vmem:[%s0 + $0x68] sm:$0xf]
  %v54 = vld [vmem:[%s0 + $0x6c] sm:$0xf]
  %v55 = vld [vmem:[%s0 + $0x70] sm:$0xf]
  %v56 = vld [vmem:[%s0 + $0x74] sm:$0xf]
  %v57 = vld [vmem:[%s0 + $0x78] sm:$0xf]
  %v58 = vld [vmem:[%s0 + $0x7c] sm:$0xf]
  %v59 = vld [vmem:[%s0 + $0x80] sm:$0xf]
  %v60 = vld [vmem:[%s0 + $0x84] sm:$0xf]
  %v61 = vld [vmem:[%s0 + $0x88] sm:$0xf]
  %v62 = vld [vmem:[%s0 + $0x8c] sm:$0xf]
  %v63 = vld [vmem:[%s0 + $0x90] sm:$0xf]
  %v64 = vld [vmem:[%s0 + $0x94] sm:$0xf]
  %v65 = vld [vmem:[%s0 + $0x98] sm:$0xf]
  %v66 = vld [vmem:[%s0 + $0x9c] sm:$0xf]
  %v67 = vld [vmem:[%s0 + $0xa0] sm:$0xf]
  %v68 = vld [vmem:[%s0 + $0xa4] sm:$0xf]
  %v69 = vld [vmem:[%s0 + $0xa8] sm:$0xf]
  %v70 = vld [vmem:[%s0 + $0xac] sm:$0xf]
  %v71 = vld [vmem:[%s0 + $0xb0] sm:$0xf]
  %v72 = vld [vmem:[%s0 + $0xb4] sm:$0xf]
  %v73 = vld [vmem:[%s0 + $0xb8] sm:$0xf]
  %v74 = vld [vmem:[%s0 + $0xbc] sm:$0xf]
  %v75 = vld [vmem:[%s0 + $0xc0] sm:$0xf]
  %v76 = vld [vmem:[%s0 + $0xc4] sm:$0xf]
  %v77 = vld [vmem:[%s0 + $0xc8] sm:$0xf]
  %v78 = vld [vmem:[%s0 + $0xcc] sm:$0xf]
  %v79 = vld [vmem:[%s0 + $0xd0] sm:$0xf]
  %v80 = vld [vmem:[%s0 + $0xd4] sm:$0xf]
  %v81 = vld [vmem:[%s0 + $0xd8] sm:$0xf]
  %v82 = vld [vmem:[%s0 + $0xdc] sm:$0xf]
  %v83 = vld [vmem:[%s0 + $0xe0] sm:$0xf]
  %v84 = vld [vmem:[%s0 + $0xe4] sm:$0xf]
  %v85 = vld [vmem:[%s0 + $0xe8] sm:$0xf]
  %v86 = vld [vmem:[%s0 + $0xec] sm:$0xf]
  %v87 = vld [vmem:[%s0 + $0xf0] sm:$0xf]
  %v88 = vld [vmem:[%s0 + $0xf4] sm:$0xf]
  %v89 = vld [vmem:[%s0 + $0xf8] sm:$0xf]
  %v90 = vld [vmem:[%s0 + $0xfc] sm:$0xf]
  %v91 = vld [vmem:[%s1] sm:$0xf]
  %v92 = vld [vmem:[%s1 + $0x4] sm:$0xf]
  %v93 = vld [vmem:[%s1 + $0x8] sm:$0xf]
  %v94 = vld [vmem:[%s1 + $0xc] sm:$0xf]
  %v95 = vld [vmem:[%s1 + $0x10] sm:$0xf]
  %v96 = vld [vmem:[%s1 + $0x14] sm:$0xf]
  %v97 = vld [vmem:[%s1 + $0x18] sm:$0xf]
  %v98 = vld [vmem:[%s1 + $0x1c] sm:$0xf]
  %v99 = vld [vmem:[%s1 + $0x20] sm:$0xf]
  %v100 = vld [vmem:[%s1 + $0x24] sm:$0xf]
  %v101 = vld [vmem:[%s1 + $0x28] sm:$0xf]
  %v102 = vld [vmem:[%s1 + $0x2c] sm:$0xf]
  %v103 = vld [vmem:[%s1 + $0x30] sm:$0xf]
  %v104 = vld [vmem:[%s1 + $0x34] sm:$0xf]
  %v105 = vld [vmem:[%s1 + $0x38] sm:$0xf]
  %v106 = vld [vmem:[%s1 + $0x3c] sm:$0xf]
  %v171 = vunpack.c.l.b16 %v27
  %v172 = vunpack.c.l.b16 %v28
  %v173 = vunpack.c.l.b16 %v29
  %v174 = vunpack.c.l.b16 %v30
  %v175 = vunpack.c.l.b16 %v31
  %v176 = vunpack.c.l.b16 %v32
  %v177 = vunpack.c.l.b16 %v33
  %v178 = vunpack.c.l.b16 %v34
  %v179 = vunpack.c.l.b16 %v35
  %v180 = vunpack.c.l.b16 %v36
  %v181 = vunpack.c.l.b16 %v37
  %v182 = vunpack.c.l.b16 %v38
  %v183 = vunpack.c.l.b16 %v39
  %v184 = vunpack.c.l.b16 %v40
  %v185 = vunpack.c.l.b16 %v41
  %v186 = vunpack.c.l.b16 %v42
  %v187 = vunpack.c.l.b16 %v43
  %v188 = vunpack.c.l.b16 %v44
  %v189 = vunpack.c.l.b16 %v45
  %v190 = vunpack.c.l.b16 %v46
  %v191 = vunpack.c.l.b16 %v47
  %v192 = vunpack.c.l.b16 %v48
  %v193 = vunpack.c.l.b16 %v49
  %v194 = vunpack.c.l.b16 %v50
  %v195 = vunpack.c.l.b16 %v51
  %v196 = vunpack.c.l.b16 %v52
  %v197 = vunpack.c.l.b16 %v53
  %v198 = vunpack.c.l.b16 %v54
  %v199 = vunpack.c.l.b16 %v55
  %v200 = vunpack.c.l.b16 %v56
  %v201 = vunpack.c.l.b16 %v57
  %v202 = vunpack.c.l.b16 %v58
  %v203 = vunpack.c.l.b16 %v59
  %v204 = vunpack.c.l.b16 %v60
  %v205 = vunpack.c.l.b16 %v61
  %v206 = vunpack.c.l.b16 %v62
  %v207 = vunpack.c.l.b16 %v63
  %v208 = vunpack.c.l.b16 %v64
  %v209 = vunpack.c.l.b16 %v65
  %v210 = vunpack.c.l.b16 %v66
  %v211 = vunpack.c.l.b16 %v67
  %v212 = vunpack.c.l.b16 %v68
  %v213 = vunpack.c.l.b16 %v69
  %v214 = vunpack.c.l.b16 %v70
  %v215 = vunpack.c.l.b16 %v71
  %v216 = vunpack.c.l.b16 %v72
  %v217 = vunpack.c.l.b16 %v73
  %v218 = vunpack.c.l.b16 %v74
  %v219 = vunpack.c.l.b16 %v75
  %v220 = vunpack.c.l.b16 %v76
  %v221 = vunpack.c.l.b16 %v77
  %v222 = vunpack.c.l.b16 %v78
  %v223 = vunpack.c.l.b16 %v79
  %v224 = vunpack.c.l.b16 %v80
  %v225 = vunpack.c.l.b16 %v81
  %v226 = vunpack.c.l.b16 %v82
  %v227 = vunpack.c.l.b16 %v83
  %v228 = vunpack.c.l.b16 %v84
  %v229 = vunpack.c.l.b16 %v85
  %v230 = vunpack.c.l.b16 %v86
  %v231 = vunpack.c.l.b16 %v87
  %v232 = vunpack.c.l.b16 %v88
  %v233 = vunpack.c.l.b16 %v89
  %v234 = vunpack.c.l.b16 %v90
  %v235 = vpack.c.b16 %v172, %v171
  %v236 = vpack.c.b16 %v174, %v173
  %v237 = vpack.c.b16 %v176, %v175
  %v238 = vpack.c.b16 %v178, %v177
  %v239 = vpack.c.b16 %v180, %v179
  %v240 = vpack.c.b16 %v182, %v181
  %v241 = vpack.c.b16 %v184, %v183
  %v242 = vpack.c.b16 %v186, %v185
  %v243 = vpack.c.b16 %v188, %v187
  %v244 = vpack.c.b16 %v190, %v189
  %v245 = vpack.c.b16 %v192, %v191
  %v246 = vpack.c.b16 %v194, %v193
  %v247 = vpack.c.b16 %v196, %v195
  %v248 = vpack.c.b16 %v198, %v197
  %v249 = vpack.c.b16 %v200, %v199
  %v250 = vpack.c.b16 %v202, %v201
  %v251 = vpack.c.b16 %v204, %v203
  %v252 = vpack.c.b16 %v206, %v205
  %v253 = vpack.c.b16 %v208, %v207
  %v254 = vpack.c.b16 %v210, %v209
  %v255 = vpack.c.b16 %v212, %v211
  %v256 = vpack.c.b16 %v214, %v213
  %v257 = vpack.c.b16 %v216, %v215
  %v258 = vpack.c.b16 %v218, %v217
  %v259 = vpack.c.b16 %v220, %v219
  %v260 = vpack.c.b16 %v222, %v221
  %v261 = vpack.c.b16 %v224, %v223
  %v262 = vpack.c.b16 %v226, %v225
  %v263 = vpack.c.b16 %v228, %v227
  %v264 = vpack.c.b16 %v230, %v229
  %v265 = vpack.c.b16 %v232, %v231
  %v266 = vpack.c.b16 %v234, %v233
  %v315 = vunpack.c.l.b16 %v91
  %v316 = vunpack.c.l.b16 %v92
  %v317 = vunpack.c.l.b16 %v93
  %v318 = vunpack.c.l.b16 %v94
  %v319 = vunpack.c.l.b16 %v95
  %v320 = vunpack.c.l.b16 %v96
  %v321 = vunpack.c.l.b16 %v97
  %v322 = vunpack.c.l.b16 %v98
  %v323 = vunpack.c.l.b16 %v99
  %v324 = vunpack.c.l.b16 %v100
  %v325 = vunpack.c.l.b16 %v101
  %v326 = vunpack.c.l.b16 %v102
  %v327 = vunpack.c.l.b16 %v103
  %v328 = vunpack.c.l.b16 %v104
  %v329 = vunpack.c.l.b16 %v105
  %v330 = vunpack.c.l.b16 %v106
  %v331 = vpack.c.b16 %v316, %v315
  %v332 = vpack.c.b16 %v318, %v317
  %v333 = vpack.c.b16 %v320, %v319
  %v334 = vpack.c.b16 %v322, %v321
  %v335 = vpack.c.b16 %v324, %v323
  %v336 = vpack.c.b16 %v326, %v325
  %v337 = vpack.c.b16 %v328, %v327
  %v338 = vpack.c.b16 %v330, %v329
  %347 = vmatprep.subr.bf16.mxu0 0
  %348 = vmatpush1.bf16.msra.mxu0 %v338
  %349 = vmatprep.subr.bf16.mxu0 0
  %350 = vmatpush1.bf16.msra.mxu0 %v337
  %351 = vmatprep.subr.bf16.mxu0 0
  %352 = vmatpush1.bf16.msra.mxu0 %v336
  %353 = vmatprep.subr.bf16.mxu0 0
  %354 = vmatpush1.bf16.msra.mxu0 %v335
  %355 = vmatprep.subr.bf16.mxu0 0
  %356 = vmatpush1.bf16.msra.mxu0 %v334
  %357 = vmatprep.subr.bf16.mxu0 0
  %358 = vmatpush1.bf16.msra.mxu0 %v333
  %359 = vmatprep.subr.bf16.mxu0 0
  %360 = vmatpush1.bf16.msra.mxu0 %v332
  %361 = vmatprep.subr.bf16.mxu0 0
  %362 = vmatpush1.bf16.msra.mxu0 %v331
  %363 = vmatprep.subr.bf16.mxu0 0
  %364 = vmatpush2.bf16.msra.mxu0 0
  %365 = vmatprep.subr.bf16.mxu0 0
  %366 = vmatpush2.bf16.msra.mxu0 0
  %367 = vmatprep.subr.bf16.mxu0 0
  %368 = vmatpush2.bf16.msra.mxu0 0
  %369 = vmatprep.subr.bf16.mxu0 0
  %370 = vmatpush2.bf16.msra.mxu0 0
  %371 = vmatprep.subr.bf16.mxu0 0
  %372 = vmatpush2.bf16.msra.mxu0 0
  %373 = vmatprep.subr.bf16.mxu0 0
  %374 = vmatpush2.bf16.msra.mxu0 0
  %375 = vmatprep.subr.bf16.mxu0 0
  %376 = vmatpush2.bf16.msra.mxu0 0
  %377 = vmatprep.subr.bf16.mxu0 0
  %378 = vmatpush2.bf16.msra.mxu0 0
  %379 = vmatprep.mubr.bf16.mxu0 0
  %380 = vmatmul.mubr.bf16.gmra.mxu0 %v235
  %v381 = vpop.f32.mrf.mxu0
  %v382 = vadd.f32 0.0, %v381
  %v383 = vpop.f32.mrf.mxu0
  %v384 = vpop.f32.mrf.mxu0
  %v385 = vadd.f32 0.0, %v384
  %v386 = vpop.f32.mrf.mxu0
  %387 = vmatprep.mubr.bf16.mxu0 0
  %388 = vmatmul.mubr.bf16.gmra.mxu0 %v236
  %v389 = vpop.f32.mrf.mxu0
  %v390 = vadd.f32 0.0, %v389
  %v391 = vpop.f32.mrf.mxu0
  %v392 = vpop.f32.mrf.mxu0
  %v393 = vadd.f32 0.0, %v392
  %v394 = vpop.f32.mrf.mxu0
  %395 = vmatprep.mubr.bf16.mxu0 0
  %396 = vmatmul.mubr.bf16.gmra.mxu0 %v237
  %v397 = vpop.f32.mrf.mxu0
  %v398 = vadd.f32 0.0, %v397
  %v399 = vpop.f32.mrf.mxu0
  %v400 = vpop.f32.mrf.mxu0
  %v401 = vadd.f32 0.0, %v400
  %v402 = vpop.f32.mrf.mxu0
  %403 = vmatprep.mubr.bf16.mxu0 0
  %404 = vmatmul.mubr.bf16.gmra.mxu0 %v238
  %v405 = vpop.f32.mrf.mxu0
  %v406 = vadd.f32 0.0, %v405
  %v407 = vpop.f32.mrf.mxu0
  %v408 = vpop.f32.mrf.mxu0
  %v409 = vadd.f32 0.0, %v408
  %v410 = vpop.f32.mrf.mxu0
  %411 = vmatprep.mubr.bf16.mxu0 0
  %412 = vmatmul.mubr.bf16.gmra.mxu0 %v239
  %v413 = vpop.f32.mrf.mxu0
  %v414 = vadd.f32 0.0, %v413
  %v415 = vpop.f32.mrf.mxu0
  %v416 = vpop.f32.mrf.mxu0
  %v417 = vadd.f32 0.0, %v416
  %v418 = vpop.f32.mrf.mxu0
  %419 = vmatprep.mubr.bf16.mxu0 0
  %420 = vmatmul.mubr.bf16.gmra.mxu0 %v240
  %v421 = vpop.f32.mrf.mxu0
  %v422 = vadd.f32 0.0, %v421
  %v423 = vpop.f32.mrf.mxu0
  %v424 = vpop.f32.mrf.mxu0
  %v425 = vadd.f32 0.0, %v424
  %v426 = vpop.f32.mrf.mxu0
  %427 = vmatprep.mubr.bf16.mxu0 0
  %428 = vmatmul.mubr.bf16.gmra.mxu0 %v241
  %v429 = vpop.f32.mrf.mxu0
  %v430 = vadd.f32 0.0, %v429
  %v431 = vpop.f32.mrf.mxu0
  %v432 = vpop.f32.mrf.mxu0
  %v433 = vadd.f32 0.0, %v432
  %v434 = vpop.f32.mrf.mxu0
  %435 = vmatprep.mubr.bf16.mxu0 0
  %436 = vmatmul.mubr.bf16.gmra.mxu0 %v242
  %v437 = vpop.f32.mrf.mxu0
  %v438 = vadd.f32 0.0, %v437
  %v439 = vpop.f32.mrf.mxu0
  %v440 = vpop.f32.mrf.mxu0
  %v441 = vadd.f32 0.0, %v440
  %v442 = vpop.f32.mrf.mxu0
  %443 = vmatprep.mubr.bf16.mxu0 0
  %444 = vmatmul.mubr.bf16.gmra.mxu0 %v243
  %v445 = vpop.f32.mrf.mxu0
  %v446 = vadd.f32 0.0, %v445
  %v447 = vpop.f32.mrf.mxu0
  %v448 = vpop.f32.mrf.mxu0
  %v449 = vadd.f32 0.0, %v448
  %v450 = vpop.f32.mrf.mxu0
  %451 = vmatprep.mubr.bf16.mxu0 0
  %452 = vmatmul.mubr.bf16.gmra.mxu0 %v244
  %v453 = vpop.f32.mrf.mxu0
  %v454 = vadd.f32 0.0, %v453
  %v455 = vpop.f32.mrf.mxu0
  %v456 = vpop.f32.mrf.mxu0
  %v457 = vadd.f32 0.0, %v456
  %v458 = vpop.f32.mrf.mxu0
  %459 = vmatprep.mubr.bf16.mxu0 0
  %460 = vmatmul.mubr.bf16.gmra.mxu0 %v245
  %v461 = vpop.f32.mrf.mxu0
  %v462 = vadd.f32 0.0, %v461
  %v463 = vpop.f32.mrf.mxu0
  %v464 = vpop.f32.mrf.mxu0
  %v465 = vadd.f32 0.0, %v464
  %v466 = vpop.f32.mrf.mxu0
  %467 = vmatprep.mubr.bf16.mxu0 0
  %468 = vmatmul.mubr.bf16.gmra.mxu0 %v246
  %v469 = vpop.f32.mrf.mxu0
  %v470 = vadd.f32 0.0, %v469
  %v471 = vpop.f32.mrf.mxu0
  %v472 = vpop.f32.mrf.mxu0
  %v473 = vadd.f32 0.0, %v472
  %v474 = vpop.f32.mrf.mxu0
  %475 = vmatprep.mubr.bf16.mxu0 0
  %476 = vmatmul.mubr.bf16.gmra.mxu0 %v247
  %v477 = vpop.f32.mrf.mxu0
  %v478 = vadd.f32 0.0, %v477
  %v479 = vpop.f32.mrf.mxu0
  %v480 = vpop.f32.mrf.mxu0
  %v481 = vadd.f32 0.0, %v480
  %v482 = vpop.f32.mrf.mxu0
  %483 = vmatprep.mubr.bf16.mxu0 0
  %484 = vmatmul.mubr.bf16.gmra.mxu0 %v248
  %v485 = vpop.f32.mrf.mxu0
  %v486 = vadd.f32 0.0, %v485
  %v487 = vpop.f32.mrf.mxu0
  %v488 = vpop.f32.mrf.mxu0
  %v489 = vadd.f32 0.0, %v488
  %v490 = vpop.f32.mrf.mxu0
  %491 = vmatprep.mubr.bf16.mxu0 0
  %492 = vmatmul.mubr.bf16.gmra.mxu0 %v249
  %v493 = vpop.f32.mrf.mxu0
  %v494 = vadd.f32 0.0, %v493
  %v495 = vpop.f32.mrf.mxu0
  %v496 = vpop.f32.mrf.mxu0
  %v497 = vadd.f32 0.0, %v496
  %v498 = vpop.f32.mrf.mxu0
  %499 = vmatprep.mubr.bf16.mxu0 0
  %500 = vmatmul.mubr.bf16.gmra.mxu0 %v250
  %v501 = vpop.f32.mrf.mxu0
  %v502 = vadd.f32 0.0, %v501
  %v503 = vpop.f32.mrf.mxu0
  %v504 = vpop.f32.mrf.mxu0
  %v505 = vadd.f32 0.0, %v504
  %v506 = vpop.f32.mrf.mxu0
  %507 = vmatprep.mubr.bf16.mxu0 0
  %508 = vmatmul.mubr.bf16.gmra.mxu0 %v251
  %v509 = vpop.f32.mrf.mxu0
  %v510 = vadd.f32 0.0, %v509
  %v511 = vpop.f32.mrf.mxu0
  %v512 = vpop.f32.mrf.mxu0
  %v513 = vadd.f32 0.0, %v512
  %v514 = vpop.f32.mrf.mxu0
  %515 = vmatprep.mubr.bf16.mxu0 0
  %516 = vmatmul.mubr.bf16.gmra.mxu0 %v252
  %v517 = vpop.f32.mrf.mxu0
  %v518 = vadd.f32 0.0, %v517
  %v519 = vpop.f32.mrf.mxu0
  %v520 = vpop.f32.mrf.mxu0
  %v521 = vadd.f32 0.0, %v520
  %v522 = vpop.f32.mrf.mxu0
  %523 = vmatprep.mubr.bf16.mxu0 0
  %524 = vmatmul.mubr.bf16.gmra.mxu0 %v253
  %v525 = vpop.f32.mrf.mxu0
  %v526 = vadd.f32 0.0, %v525
  %v527 = vpop.f32.mrf.mxu0
  %v528 = vpop.f32.mrf.mxu0
  %v529 = vadd.f32 0.0, %v528
  %v530 = vpop.f32.mrf.mxu0
  %531 = vmatprep.mubr.bf16.mxu0 0
  %532 = vmatmul.mubr.bf16.gmra.mxu0 %v254
  %v533 = vpop.f32.mrf.mxu0
  %v534 = vadd.f32 0.0, %v533
  %v535 = vpop.f32.mrf.mxu0
  %v536 = vpop.f32.mrf.mxu0
  %v537 = vadd.f32 0.0, %v536
  %v538 = vpop.f32.mrf.mxu0
  %539 = vmatprep.mubr.bf16.mxu0 0
  %540 = vmatmul.mubr.bf16.gmra.mxu0 %v255
  %v541 = vpop.f32.mrf.mxu0
  %v542 = vadd.f32 0.0, %v541
  %v543 = vpop.f32.mrf.mxu0
  %v544 = vpop.f32.mrf.mxu0
  %v545 = vadd.f32 0.0, %v544
  %v546 = vpop.f32.mrf.mxu0
  %547 = vmatprep.mubr.bf16.mxu0 0
  %548 = vmatmul.mubr.bf16.gmra.mxu0 %v256
  %v549 = vpop.f32.mrf.mxu0
  %v550 = vadd.f32 0.0, %v549
  %v551 = vpop.f32.mrf.mxu0
  %v552 = vpop.f32.mrf.mxu0
  %v553 = vadd.f32 0.0, %v552
  %v554 = vpop.f32.mrf.mxu0
  %555 = vmatprep.mubr.bf16.mxu0 0
  %556 = vmatmul.mubr.bf16.gmra.mxu0 %v257
  %v557 = vpop.f32.mrf.mxu0
  %v558 = vadd.f32 0.0, %v557
  %v559 = vpop.f32.mrf.mxu0
  %v560 = vpop.f32.mrf.mxu0
  %v561 = vadd.f32 0.0, %v560
  %v562 = vpop.f32.mrf.mxu0
  %563 = vmatprep.mubr.bf16.mxu0 0
  %564 = vmatmul.mubr.bf16.gmra.mxu0 %v258
  %v565 = vpop.f32.mrf.mxu0
  %v566 = vadd.f32 0.0, %v565
  %v567 = vpop.f32.mrf.mxu0
  %v568 = vpop.f32.mrf.mxu0
  %v569 = vadd.f32 0.0, %v568
  %v570 = vpop.f32.mrf.mxu0
  %571 = vmatprep.mubr.bf16.mxu0 0
  %572 = vmatmul.mubr.bf16.gmra.mxu0 %v259
  %v573 = vpop.f32.mrf.mxu0
  %v574 = vadd.f32 0.0, %v573
  %v575 = vpop.f32.mrf.mxu0
  %v576 = vpop.f32.mrf.mxu0
  %v577 = vadd.f32 0.0, %v576
  %v578 = vpop.f32.mrf.mxu0
  %579 = vmatprep.mubr.bf16.mxu0 0
  %580 = vmatmul.mubr.bf16.gmra.mxu0 %v260
  %v581 = vpop.f32.mrf.mxu0
  %v582 = vadd.f32 0.0, %v581
  %v583 = vpop.f32.mrf.mxu0
  %v584 = vpop.f32.mrf.mxu0
  %v585 = vadd.f32 0.0, %v584
  %v586 = vpop.f32.mrf.mxu0
  %587 = vmatprep.mubr.bf16.mxu0 0
  %588 = vmatmul.mubr.bf16.gmra.mxu0 %v261
  %v589 = vpop.f32.mrf.mxu0
  %v590 = vadd.f32 0.0, %v589
  %v591 = vpop.f32.mrf.mxu0
  %v592 = vpop.f32.mrf.mxu0
  %v593 = vadd.f32 0.0, %v592
  %v594 = vpop.f32.mrf.mxu0
  %595 = vmatprep.mubr.bf16.mxu0 0
  %596 = vmatmul.mubr.bf16.gmra.mxu0 %v262
  %v597 = vpop.f32.mrf.mxu0
  %v598 = vadd.f32 0.0, %v597
  %v599 = vpop.f32.mrf.mxu0
  %v600 = vpop.f32.mrf.mxu0
  %v601 = vadd.f32 0.0, %v600
  %v602 = vpop.f32.mrf.mxu0
  %603 = vmatprep.mubr.bf16.mxu0 0
  %604 = vmatmul.mubr.bf16.gmra.mxu0 %v263
  %v605 = vpop.f32.mrf.mxu0
  %v606 = vadd.f32 0.0, %v605
  %v607 = vpop.f32.mrf.mxu0
  %v608 = vpop.f32.mrf.mxu0
  %v609 = vadd.f32 0.0, %v608
  %v610 = vpop.f32.mrf.mxu0
  %611 = vmatprep.mubr.bf16.mxu0 0
  %612 = vmatmul.mubr.bf16.gmra.mxu0 %v264
  %v613 = vpop.f32.mrf.mxu0
  %v614 = vadd.f32 0.0, %v613
  %v615 = vpop.f32.mrf.mxu0
  %v616 = vpop.f32.mrf.mxu0
  %v617 = vadd.f32 0.0, %v616
  %v618 = vpop.f32.mrf.mxu0
  %619 = vmatprep.mubr.bf16.mxu0 0
  %620 = vmatmul.mubr.bf16.gmra.mxu0 %v265
  %v621 = vpop.f32.mrf.mxu0
  %v622 = vadd.f32 0.0, %v621
  %v623 = vpop.f32.mrf.mxu0
  %v624 = vpop.f32.mrf.mxu0
  %v625 = vadd.f32 0.0, %v624
  %v626 = vpop.f32.mrf.mxu0
  %627 = vmatprep.mubr.bf16.mxu0 0
  %628 = vmatmul.mubr.bf16.gmra.mxu0 %v266
  %v629 = vpop.f32.mrf.mxu0
  %v630 = vadd.f32 0.0, %v629
  %v631 = vpop.f32.mrf.mxu0
  %v632 = vpop.f32.mrf.mxu0
  %v633 = vadd.f32 0.0, %v632
  %v634 = vpop.f32.mrf.mxu0
  %635 = vdwg.mxu0
  %v636 = vld [vmem:[%s2] sm:$0xff]
  %v637 = vld [vmem:[%s2 + $0x8] sm:$0xff]
  %v638 = vpack.c.bf16 %v385, %v382
  %v639 = vpack.c.bf16 %v393, %v390
  %v640 = vpack.c.bf16 %v401, %v398
  %v641 = vpack.c.bf16 %v409, %v406
  %v642 = vpack.c.bf16 %v417, %v414
  %v643 = vpack.c.bf16 %v425, %v422
  %v644 = vpack.c.bf16 %v433, %v430
  %v645 = vpack.c.bf16 %v441, %v438
  %v646 = vpack.c.bf16 %v449, %v446
  %v647 = vpack.c.bf16 %v457, %v454
  %v648 = vpack.c.bf16 %v465, %v462
  %v649 = vpack.c.bf16 %v473, %v470
  %v650 = vpack.c.bf16 %v481, %v478
  %v651 = vpack.c.bf16 %v489, %v486
  %v652 = vpack.c.bf16 %v497, %v494
  %v653 = vpack.c.bf16 %v505, %v502
  %v654 = vpack.c.bf16 %v513, %v510
  %v655 = vpack.c.bf16 %v521, %v518
  %v656 = vpack.c.bf16 %v529, %v526
  %v657 = vpack.c.bf16 %v537, %v534
  %v658 = vpack.c.bf16 %v545, %v542
  %v659 = vpack.c.bf16 %v553, %v550
  %v660 = vpack.c.bf16 %v561, %v558
  %v661 = vpack.c.bf16 %v569, %v566
  %v662 = vpack.c.bf16 %v577, %v574
  %v663 = vpack.c.bf16 %v585, %v582
  %v664 = vpack.c.bf16 %v593, %v590
  %v665 = vpack.c.bf16 %v601, %v598
  %v666 = vpack.c.bf16 %v609, %v606
  %v667 = vpack.c.bf16 %v617, %v614
  %v668 = vpack.c.bf16 %v625, %v622
  %v669 = vpack.c.bf16 %v633, %v630
  %v672 = vunpack.c.l.b16 %v636
  %v673 = vunpack.c.h.b16 %v636
  %v674 = vunpack.c.l.b16 %v637
  %v675 = vunpack.c.h.b16 %v637
  %v676 = vpack.c.b16 %v672, %v672
  %v677 = vpack.c.b16 %v673, %v673
  %v678 = vpack.c.b16 %v674, %v674
  %v679 = vpack.c.b16 %v675, %v675
  %684 = vmatprep.subr.bf16.mxu0 0
  %685 = vmatpush1.bf16.msra.mxu0 %v645
  %686 = vmatprep.subr.bf16.mxu0 0
  %687 = vmatpush1.bf16.msra.mxu0 %v644
  %688 = vmatprep.subr.bf16.mxu0 0
  %689 = vmatpush1.bf16.msra.mxu0 %v643
  %690 = vmatprep.subr.bf16.mxu0 0
  %691 = vmatpush1.bf16.msra.mxu0 %v642
  %692 = vmatprep.subr.bf16.mxu0 0
  %693 = vmatpush1.bf16.msra.mxu0 %v641
  %694 = vmatprep.subr.bf16.mxu0 0
  %695 = vmatpush1.bf16.msra.mxu0 %v640
  %696 = vmatprep.subr.bf16.mxu0 0
  %697 = vmatpush1.bf16.msra.mxu0 %v639
  %698 = vmatprep.subr.bf16.mxu0 0
  %699 = vmatpush1.bf16.msra.mxu0 %v638
  %700 = vmatprep.subr.bf16.mxu0 0
  %701 = vmatpush2.bf16.msra.mxu0 %v653
  %702 = vmatprep.subr.bf16.mxu0 0
  %703 = vmatpush2.bf16.msra.mxu0 %v652
  %704 = vmatprep.subr.bf16.mxu0 0
  %705 = vmatpush2.bf16.msra.mxu0 %v651
  %706 = vmatprep.subr.bf16.mxu0 0
  %707 = vmatpush2.bf16.msra.mxu0 %v650
  %708 = vmatprep.subr.bf16.mxu0 0
  %709 = vmatpush2.bf16.msra.mxu0 %v649
  %710 = vmatprep.subr.bf16.mxu0 0
  %711 = vmatpush2.bf16.msra.mxu0 %v648
  %712 = vmatprep.subr.bf16.mxu0 0
  %713 = vmatpush2.bf16.msra.mxu0 %v647
  %714 = vmatprep.subr.bf16.mxu0 0
  %715 = vmatpush2.bf16.msra.mxu0 %v646
  %716 = vmatprep.mubr.bf16.mxu0 %v677
  %717 = vmatmul.mubr.bf16.gmra.mxu0 %v676
  %v718 = vpop.f32.mrf.mxu0
  %v719 = vadd.f32 0.0, %v718
  %v720 = vpop.f32.mrf.mxu0
  %v721 = vpop.f32.mrf.mxu0
  %v722 = vpop.f32.mrf.mxu0
  %723 = vdwg.mxu0
  %724 = vmatprep.subr.bf16.mxu0 0
  %725 = vmatpush1.bf16.msra.mxu0 %v661
  %726 = vmatprep.subr.bf16.mxu0 0
  %727 = vmatpush1.bf16.msra.mxu0 %v660
  %728 = vmatprep.subr.bf16.mxu0 0
  %729 = vmatpush1.bf16.msra.mxu0 %v659
  %730 = vmatprep.subr.bf16.mxu0 0
  %731 = vmatpush1.bf16.msra.mxu0 %v658
  %732 = vmatprep.subr.bf16.mxu0 0
  %733 = vmatpush1.bf16.msra.mxu0 %v657
  %734 = vmatprep.subr.bf16.mxu0 0
  %735 = vmatpush1.bf16.msra.mxu0 %v656
  %736 = vmatprep.subr.bf16.mxu0 0
  %737 = vmatpush1.bf16.msra.mxu0 %v655
  %738 = vmatprep.subr.bf16.mxu0 0
  %739 = vmatpush1.bf16.msra.mxu0 %v654
  %740 = vmatprep.subr.bf16.mxu0 0
  %741 = vmatpush2.bf16.msra.mxu0 %v669
  %742 = vmatprep.subr.bf16.mxu0 0
  %743 = vmatpush2.bf16.msra.mxu0 %v668
  %744 = vmatprep.subr.bf16.mxu0 0
  %745 = vmatpush2.bf16.msra.mxu0 %v667
  %746 = vmatprep.subr.bf16.mxu0 0
  %747 = vmatpush2.bf16.msra.mxu0 %v666
  %748 = vmatprep.subr.bf16.mxu0 0
  %749 = vmatpush2.bf16.msra.mxu0 %v665
  %750 = vmatprep.subr.bf16.mxu0 0
  %751 = vmatpush2.bf16.msra.mxu0 %v664
  %752 = vmatprep.subr.bf16.mxu0 0
  %753 = vmatpush2.bf16.msra.mxu0 %v663
  %754 = vmatprep.subr.bf16.mxu0 0
  %755 = vmatpush2.bf16.msra.mxu0 %v662
  %756 = vmatprep.mubr.bf16.mxu0 %v679
  %757 = vmatmul.mubr.bf16.gmra.mxu0 %v678
  %v758 = vpop.f32.mrf.mxu0
  %v759 = vadd.f32 %v719, %v758
  %v760 = vpop.f32.mrf.mxu0
  %v761 = vpop.f32.mrf.mxu0
  %v762 = vpop.f32.mrf.mxu0
  %763 = vdwg.mxu0
  %v764 = vpack.c.bf16 %v759, %v759
  %v765 = vld [vmem:[%s3] sm:$0xf]
  %v766 = vld [vmem:[%s3 + $0x4] sm:$0xf]
  %v767 = vld [vmem:[%s3 + $0x8] sm:$0xf]
  %v768 = vld [vmem:[%s3 + $0xc] sm:$0xf]
  %v769 = vld [vmem:[%s3 + $0x10] sm:$0xf]
  %v770 = vld [vmem:[%s3 + $0x14] sm:$0xf]
  %v771 = vld [vmem:[%s3 + $0x18] sm:$0xf]
  %v772 = vld [vmem:[%s3 + $0x1c] sm:$0xf]
  %v774 = vrot.slane %v764, 1
  %v779 = vunpack.c.l.b16 %v769
  %v780 = vunpack.c.l.b16 %v770
  %v781 = vunpack.c.l.b16 %v771
  %v782 = vunpack.c.l.b16 %v772
  %v783 = vpack.c.b16 %v780, %v779
  %v784 = vpack.c.b16 %v782, %v781
  %vm787 = vcmask 261120
  %v789 = vsel %vm787, %v774, 0
  %791 = vmatprep.subr.bf16.mxu0 0
  %792 = vmatpush1.bf16.msra.mxu0 0
  %793 = vmatprep.subr.bf16.mxu0 0
  %794 = vmatpush1.bf16.msra.mxu0 0
  %795 = vmatprep.subr.bf16.mxu0 0
  %796 = vmatpush1.bf16.msra.mxu0 0
  %797 = vmatprep.subr.bf16.mxu0 0
  %798 = vmatpush1.bf16.msra.mxu0 0
  %799 = vmatprep.subr.bf16.mxu0 0
  %800 = vmatpush1.bf16.msra.mxu0 0
  %801 = vmatprep.subr.bf16.mxu0 0
  %802 = vmatpush1.bf16.msra.mxu0 0
  %803 = vmatprep.subr.bf16.mxu0 0
  %804 = vmatpush1.bf16.msra.mxu0 %v784
  %805 = vmatprep.subr.bf16.mxu0 0
  %806 = vmatpush1.bf16.msra.mxu0 %v783
  %807 = vmatprep.subr.bf16.mxu0 0
  %808 = vmatpush2.bf16.msra.mxu0 0
  %809 = vmatprep.subr.bf16.mxu0 0
  %810 = vmatpush2.bf16.msra.mxu0 0
  %811 = vmatprep.subr.bf16.mxu0 0
  %812 = vmatpush2.bf16.msra.mxu0 0
  %813 = vmatprep.subr.bf16.mxu0 0
  %814 = vmatpush2.bf16.msra.mxu0 0
  %815 = vmatprep.subr.bf16.mxu0 0
  %816 = vmatpush2.bf16.msra.mxu0 0
  %817 = vmatprep.subr.bf16.mxu0 0
  %818 = vmatpush2.bf16.msra.mxu0 0
  %819 = vmatprep.subr.bf16.mxu0 0
  %820 = vmatpush2.bf16.msra.mxu0 0
  %821 = vmatprep.subr.bf16.mxu0 0
  %822 = vmatpush2.bf16.msra.mxu0 0
  %823 = vmatprep.mubr.bf16.mxu0 0
  %824 = vmatmul.mubr.bf16.gmra.mxu0 %v789
  %v825 = vpop.f32.mrf.mxu0
  %v826 = vadd.f32 0.0, %v825
  %v827 = vpop.f32.mrf.mxu0
  %v828 = vpop.f32.mrf.mxu0
  %v829 = vpop.f32.mrf.mxu0
  %830 = vdwg.mxu0
  %v835 = vunpack.c.l.b16 %v765
  %v836 = vunpack.c.l.b16 %v766
  %v837 = vunpack.c.l.b16 %v767
  %v838 = vunpack.c.l.b16 %v768
  %v839 = vpack.c.b16 %v836, %v835
  %v840 = vpack.c.b16 %v838, %v837
  %v844 = vsel %vm787, %v764, 0
  %846 = vmatprep.subr.bf16.mxu0 0
  %847 = vmatpush1.bf16.msra.mxu0 0
  %848 = vmatprep.subr.bf16.mxu0 0
  %849 = vmatpush1.bf16.msra.mxu0 0
  %850 = vmatprep.subr.bf16.mxu0 0
  %851 = vmatpush1.bf16.msra.mxu0 0
  %852 = vmatprep.subr.bf16.mxu0 0
  %853 = vmatpush1.bf16.msra.mxu0 0
  %854 = vmatprep.subr.bf16.mxu0 0
  %855 = vmatpush1.bf16.msra.mxu0 0
  %856 = vmatprep.subr.bf16.mxu0 0
  %857 = vmatpush1.bf16.msra.mxu0 0
  %858 = vmatprep.subr.bf16.mxu0 0
  %859 = vmatpush1.bf16.msra.mxu0 %v840
  %860 = vmatprep.subr.bf16.mxu0 0
  %861 = vmatpush1.bf16.msra.mxu0 %v839
  %862 = vmatprep.subr.bf16.mxu0 0
  %863 = vmatpush2.bf16.msra.mxu0 0
  %864 = vmatprep.subr.bf16.mxu0 0
  %865 = vmatpush2.bf16.msra.mxu0 0
  %866 = vmatprep.subr.bf16.mxu0 0
  %867 = vmatpush2.bf16.msra.mxu0 0
  %868 = vmatprep.subr.bf16.mxu0 0
  %869 = vmatpush2.bf16.msra.mxu0 0
  %870 = vmatprep.subr.bf16.mxu0 0
  %871 = vmatpush2.bf16.msra.mxu0 0
  %872 = vmatprep.subr.bf16.mxu0 0
  %873 = vmatpush2.bf16.msra.mxu0 0
  %874 = vmatprep.subr.bf16.mxu0 0
  %875 = vmatpush2.bf16.msra.mxu0 0
  %876 = vmatprep.subr.bf16.mxu0 0
  %877 = vmatpush2.bf16.msra.mxu0 0
  %878 = vmatprep.mubr.bf16.mxu0 0
  %879 = vmatmul.mubr.bf16.gmra.mxu0 %v844
  %v880 = vpop.f32.mrf.mxu0
  %v881 = vadd.f32 %v826, %v880
  %v882 = vpop.f32.mrf.mxu0
  %v883 = vpop.f32.mrf.mxu0
  %v884 = vpop.f32.mrf.mxu0
  %885 = vdwg.mxu0
  %v886 = vld [vmem:[%s3 + $0x20] sm:$0xf]
  %v887 = vld [vmem:[%s3 + $0x24] sm:$0xf]
  %v888 = vld [vmem:[%s3 + $0x28] sm:$0xf]
  %v889 = vld [vmem:[%s3 + $0x2c] sm:$0xf]
  %v890 = vrot.slane %v764, 2
  %v895 = vunpack.c.l.b16 %v886
  %v896 = vunpack.c.l.b16 %v887
  %v897 = vunpack.c.l.b16 %v888
  %v898 = vunpack.c.l.b16 %v889
  %v899 = vpack.c.b16 %v896, %v895
  %v900 = vpack.c.b16 %v898, %v897
  %v904 = vsel %vm787, %v890, 0
  %906 = vmatprep.subr.bf16.mxu0 0
  %907 = vmatpush1.bf16.msra.mxu0 0
  %908 = vmatprep.subr.bf16.mxu0 0
  %909 = vmatpush1.bf16.msra.mxu0 0
  %910 = vmatprep.subr.bf16.mxu0 0
  %911 = vmatpush1.bf16.msra.mxu0 0
  %912 = vmatprep.subr.bf16.mxu0 0
  %913 = vmatpush1.bf16.msra.mxu0 0
  %914 = vmatprep.subr.bf16.mxu0 0
  %915 = vmatpush1.bf16.msra.mxu0 0
  %916 = vmatprep.subr.bf16.mxu0 0
  %917 = vmatpush1.bf16.msra.mxu0 0
  %918 = vmatprep.subr.bf16.mxu0 0
  %919 = vmatpush1.bf16.msra.mxu0 %v900
  %920 = vmatprep.subr.bf16.mxu0 0
  %921 = vmatpush1.bf16.msra.mxu0 %v899
  %922 = vmatprep.subr.bf16.mxu0 0
  %923 = vmatpush2.bf16.msra.mxu0 0
  %924 = vmatprep.subr.bf16.mxu0 0
  %925 = vmatpush2.bf16.msra.mxu0 0
  %926 = vmatprep.subr.bf16.mxu0 0
  %927 = vmatpush2.bf16.msra.mxu0 0
  %928 = vmatprep.subr.bf16.mxu0 0
  %929 = vmatpush2.bf16.msra.mxu0 0
  %930 = vmatprep.subr.bf16.mxu0 0
  %931 = vmatpush2.bf16.msra.mxu0 0
  %932 = vmatprep.subr.bf16.mxu0 0
  %933 = vmatpush2.bf16.msra.mxu0 0
  %934 = vmatprep.subr.bf16.mxu0 0
  %935 = vmatpush2.bf16.msra.mxu0 0
  %936 = vmatprep.subr.bf16.mxu0 0
  %937 = vmatpush2.bf16.msra.mxu0 0
  %938 = vmatprep.mubr.bf16.mxu0 0
  %939 = vmatmul.mubr.bf16.gmra.mxu0 %v904
  %v940 = vpop.f32.mrf.mxu0
  %v941 = vadd.f32 0.0, %v940
  %v942 = vpop.f32.mrf.mxu0
  %v943 = vpop.f32.mrf.mxu0
  %v944 = vpop.f32.mrf.mxu0
  %945 = vdwg.mxu0
  %v946 = vadd.f32 %v881, %v941
  %v947 = vld [vmem:[%s3 + $0x30] sm:$0xf]
  %v948 = vld [vmem:[%s3 + $0x34] sm:$0xf]
  %v949 = vld [vmem:[%s3 + $0x38] sm:$0xf]
  %v950 = vld [vmem:[%s3 + $0x3c] sm:$0xf]
  %v951 = vrot.slane %v764, 3
  %v956 = vunpack.c.l.b16 %v947
  %v957 = vunpack.c.l.b16 %v948
  %v958 = vunpack.c.l.b16 %v949
  %v959 = vunpack.c.l.b16 %v950
  %v960 = vpack.c.b16 %v957, %v956
  %v961 = vpack.c.b16 %v959, %v958
  %v965 = vsel %vm787, %v951, 0
  %967 = vmatprep.subr.bf16.mxu0 0
  %968 = vmatpush1.bf16.msra.mxu0 0
  %969 = vmatprep.subr.bf16.mxu0 0
  %970 = vmatpush1.bf16.msra.mxu0 0
  %971 = vmatprep.subr.bf16.mxu0 0
  %972 = vmatpush1.bf16.msra.mxu0 0
  %973 = vmatprep.subr.bf16.mxu0 0
  %974 = vmatpush1.bf16.msra.mxu0 0
  %975 = vmatprep.subr.bf16.mxu0 0
  %976 = vmatpush1.bf16.msra.mxu0 0
  %977 = vmatprep.subr.bf16.mxu0 0
  %978 = vmatpush1.bf16.msra.mxu0 0
  %979 = vmatprep.subr.bf16.mxu0 0
  %980 = vmatpush1.bf16.msra.mxu0 %v961
  %981 = vmatprep.subr.bf16.mxu0 0
  %982 = vmatpush1.bf16.msra.mxu0 %v960
  %983 = vmatprep.subr.bf16.mxu0 0
  %984 = vmatpush2.bf16.msra.mxu0 0
  %985 = vmatprep.subr.bf16.mxu0 0
  %986 = vmatpush2.bf16.msra.mxu0 0
  %987 = vmatprep.subr.bf16.mxu0 0
  %988 = vmatpush2.bf16.msra.mxu0 0
  %989 = vmatprep.subr.bf16.mxu0 0
  %990 = vmatpush2.bf16.msra.mxu0 0
  %991 = vmatprep.subr.bf16.mxu0 0
  %992 = vmatpush2.bf16.msra.mxu0 0
  %993 = vmatprep.subr.bf16.mxu0 0
  %994 = vmatpush2.bf16.msra.mxu0 0
  %995 = vmatprep.subr.bf16.mxu0 0
  %996 = vmatpush2.bf16.msra.mxu0 0
  %997 = vmatprep.subr.bf16.mxu0 0
  %998 = vmatpush2.bf16.msra.mxu0 0
  %999 = vmatprep.mubr.bf16.mxu0 0
  %1000 = vmatmul.mubr.bf16.gmra.mxu0 %v965
  %v1001 = vpop.f32.mrf.mxu0
  %v1002 = vadd.f32 0.0, %v1001
  %v1003 = vpop.f32.mrf.mxu0
  %v1004 = vpop.f32.mrf.mxu0
  %v1005 = vpop.f32.mrf.mxu0
  %1006 = vdwg.mxu0
  %v1007 = vadd.f32 %v946, %v1002
  %v1008 = vld [vmem:[%s4] sm:$0x1]
  %v1010 = vlaneseq
  %v1011 = vshrl.u32 %v1010, 7
  %v1012 = vsub.s32 0, %v1011
  %v1013 = vrot.slane %v1008, %v1012
  %v1015 = vadd.f32 %v1007, %v1013
  %vm1016 = vcmp.ge.f32.partialorder %v1015, 0.0
  %v1017 = vmul.f32 %v1015, 0.01
  %v1018 = vsel %vm1016, %v1015, %v1017
  %v1019 = vpack.c.bf16 %v1018, %v1018
  %v1020 = vld [vmem:[%s5] sm:$0xf]
  %v1021 = vld [vmem:[%s5 + $0x4] sm:$0xf]
  %v1022 = vld [vmem:[%s5 + $0x8] sm:$0xf]
  %v1023 = vld [vmem:[%s5 + $0xc] sm:$0xf]
  %v1024 = vld [vmem:[%s5 + $0x10] sm:$0xf]
  %v1025 = vld [vmem:[%s5 + $0x14] sm:$0xf]
  %v1026 = vld [vmem:[%s5 + $0x18] sm:$0xf]
  %v1027 = vld [vmem:[%s5 + $0x1c] sm:$0xf]
  %v1028 = vld [vmem:[%s5 + $0x20] sm:$0xf]
  %v1029 = vld [vmem:[%s5 + $0x24] sm:$0xf]
  %v1030 = vld [vmem:[%s5 + $0x28] sm:$0xf]
  %v1031 = vld [vmem:[%s5 + $0x2c] sm:$0xf]
  %v1032 = vld [vmem:[%s5 + $0x30] sm:$0xf]
  %v1033 = vld [vmem:[%s5 + $0x34] sm:$0xf]
  %v1034 = vld [vmem:[%s5 + $0x38] sm:$0xf]
  %v1035 = vld [vmem:[%s5 + $0x3c] sm:$0xf]
  %v1036 = vld [vmem:[%s6] sm:$0x1]
  %v1038 = vlaneseq
  %v1039 = vshrl.u32 %v1038, 7
  %v1040 = vsub.s32 0, %v1039
  %v1041 = vrot.slane %v1036, %v1040
  %v1059 = vunpack.c.l.b16 %v1020
  %v1060 = vunpack.c.l.b16 %v1021
  %v1061 = vunpack.c.l.b16 %v1022
  %v1062 = vunpack.c.l.b16 %v1023
  %v1063 = vunpack.c.l.b16 %v1024
  %v1064 = vunpack.c.l.b16 %v1025
  %v1065 = vunpack.c.l.b16 %v1026
  %v1066 = vunpack.c.l.b16 %v1027
  %v1067 = vunpack.c.l.b16 %v1028
  %v1068 = vunpack.c.l.b16 %v1029
  %v1069 = vunpack.c.l.b16 %v1030
  %v1070 = vunpack.c.l.b16 %v1031
  %v1071 = vunpack.c.l.b16 %v1032
  %v1072 = vunpack.c.l.b16 %v1033
  %v1073 = vunpack.c.l.b16 %v1034
  %v1074 = vunpack.c.l.b16 %v1035
  %v1075 = vpack.c.b16 %v1060, %v1059
  %v1076 = vpack.c.b16 %v1062, %v1061
  %v1077 = vpack.c.b16 %v1064, %v1063
  %v1078 = vpack.c.b16 %v1066, %v1065
  %v1079 = vpack.c.b16 %v1068, %v1067
  %v1080 = vpack.c.b16 %v1070, %v1069
  %v1081 = vpack.c.b16 %v1072, %v1071
  %v1082 = vpack.c.b16 %v1074, %v1073
  %1091 = vmatprep.subr.bf16.mxu0 0
  %1092 = vmatpush1.bf16.msra.mxu0 %v1082
  %1093 = vmatprep.subr.bf16.mxu0 0
  %1094 = vmatpush1.bf16.msra.mxu0 %v1081
  %1095 = vmatprep.subr.bf16.mxu0 0
  %1096 = vmatpush1.bf16.msra.mxu0 %v1080
  %1097 = vmatprep.subr.bf16.mxu0 0
  %1098 = vmatpush1.bf16.msra.mxu0 %v1079
  %1099 = vmatprep.subr.bf16.mxu0 0
  %1100 = vmatpush1.bf16.msra.mxu0 %v1078
  %1101 = vmatprep.subr.bf16.mxu0 0
  %1102 = vmatpush1.bf16.msra.mxu0 %v1077
  %1103 = vmatprep.subr.bf16.mxu0 0
  %1104 = vmatpush1.bf16.msra.mxu0 %v1076
  %1105 = vmatprep.subr.bf16.mxu0 0
  %1106 = vmatpush1.bf16.msra.mxu0 %v1075
  %1107 = vmatprep.subr.bf16.mxu0 0
  %1108 = vmatpush2.bf16.msra.mxu0 0
  %1109 = vmatprep.subr.bf16.mxu0 0
  %1110 = vmatpush2.bf16.msra.mxu0 0
  %1111 = vmatprep.subr.bf16.mxu0 0
  %1112 = vmatpush2.bf16.msra.mxu0 0
  %1113 = vmatprep.subr.bf16.mxu0 0
  %1114 = vmatpush2.bf16.msra.mxu0 0
  %1115 = vmatprep.subr.bf16.mxu0 0
  %1116 = vmatpush2.bf16.msra.mxu0 0
  %1117 = vmatprep.subr.bf16.mxu0 0
  %1118 = vmatpush2.bf16.msra.mxu0 0
  %1119 = vmatprep.subr.bf16.mxu0 0
  %1120 = vmatpush2.bf16.msra.mxu0 0
  %1121 = vmatprep.subr.bf16.mxu0 0
  %1122 = vmatpush2.bf16.msra.mxu0 0
  %1123 = vmatprep.mubr.bf16.mxu0 0
  %1124 = vmatmul.mubr.bf16.gmra.mxu0 %v1019
  %v1125 = vpop.f32.mrf.mxu0
  %v1126 = vadd.f32 %v1041, %v1125
  %v1127 = vpop.f32.mrf.mxu0
  %v1128 = vpop.f32.mrf.mxu0
  %v1129 = vpop.f32.mrf.mxu0
  %1130 = vdwg.mxu0
  %1131 = vst [vmem:[%s7] sm:$0x3] %v1126
  // Predicated region
  $region30: #{landmark_regression_forward.1} parent=0 // pred_check
    _
  $region31: #{landmark_regression_forward.1} parent=0 // pred_check_branch
    %1133 = sbr.rel (0) target = $region33
  $region32: #{landmark_regression_forward.1} parent=0 // pred_region
    _
  $region33: #{landmark_regression_forward.1} parent=0 // pred_fallthru
    _
  // Predicated region
  $region34: #{landmark_regression_forward.1} parent=0 // pred_check
    _
  $region35: #{landmark_regression_forward.1} parent=0 // pred_check_branch
    %1135 = sbr.rel (0) target = $region37
  $region36: #{landmark_regression_forward.1} parent=0 // pred_region
    _
  $region37: #{landmark_regression_forward.1} parent=0 // pred_fallthru
    _

</llo_original>
